<compile_context>
chip_gen: v5e
topology: v5e:2x2
jax: 0.10.0
libtpu: 0.0.40
codegen_flags: <defaults>
</compile_context>

<pallas_src>
import math

import jax
import jax.numpy as jnp
from jax import lax
from jax.experimental import pallas as pl
from jax.experimental.pallas import tpu as pltpu

LANE = 128
SUBLANE = 8


def _round_up(x: int, m: int) -> int:
    return (x + m - 1) // m * m


# --------------------------------------------------------------------------
# Kernel
# --------------------------------------------------------------------------
def _make_contextnet_kernel(n_linear: int, n_prototypes: int, packed: bool,
                            compute_dtype):
    """n_linear = #hidden layers + final feat projection."""

    def kernel(*refs):
        # refs layout:
        #   [0]                  x_ref      (TB, in_pad)        compute_dtype
        #   [1 .. 2*n_linear]    (W, b)     W:(in_pad,out_pad)  compute_dtype
        #                                   b:(1, out_pad)      f32
        #   [.. +1]              wpT_ref    (F_pad, P_pad)      compute_dtype
        #   [.. +2]              wg_ref     gather weight, f32
        #                          packed:   (P_pad, 128)  (shifted by P lanes)
        #                          unpacked: (P_pad, F_pad)
        #   outputs:
        #     packed:   [-1] packed_ref (TB, 128)
        #     unpacked: [-2] out_ref (TB, P_pad), [-1] ctx_ref (TB, F_pad)
        idx = 0
        x_ref = refs[idx]
        idx += 1
        h = x_ref[...]

        for layer in range(n_linear):
            w = refs[idx][...]
            b = refs[idx + 1][...]
            idx += 2
            # MXU matmul with f32 accumulation; bias add / ReLU in f32.
            h = jnp.dot(h.astype(w.dtype), w,
                        preferred_element_type=jnp.float32) + b
            if layer < n_linear - 1:
                h = jnp.maximum(h, 0.0)
            if compute_dtype != jnp.float32:
                # Keep the activation chain narrow between layers (v6e/v7x).
                h = h.astype(compute_dtype)

        wpT = refs[idx][...]          # (F_pad, P_pad)
        wg = refs[idx + 1][...]       # gather weight, f32
        idx += 2
        out_ref = refs[idx]

        # logits = feat @ Wp^T, MXU-friendly [K, N] layout; padded prototype
        # columns of wpT are zeros, so pad lanes of logits are exact zeros.
        logits = jnp.dot(h.astype(wpT.dtype), wpT,
                         preferred_element_type=jnp.float32)   # (TB, P_pad)

        # Masked argmax over real prototype lanes (first-occurrence tie-break,
        # like torch/jnp argmax), then a one-hot matmul gathers the prototype
        # row (no dynamic gather on TPU).  This chain is VPU/XLU filler under
        # the DMA-bound regime; fuse further only if profiling shows it binds.
        col = lax.broadcasted_iota(jnp.int32, logits.shape, 1)
        valid = col < n_prototypes
        masked = jnp.where(valid, logits, -jnp.inf)
        row_max = jnp.max(masked, axis=1, keepdims=True)
        is_max = (masked == row_max) & valid
        assignment = jnp.min(jnp.where(is_max, col, logits.shape[1]),
                             axis=1, keepdims=True)            # (TB, 1) int32
        onehot = (col == assignment).astype(jnp.float32)        # (TB, P_pad)
        ctx = jnp.dot(onehot, wg, preferred_element_type=jnp.float32)

        if packed:
            # wg was pre-shifted by P lanes, so ctx occupies lanes [P, P+F)
            # and is zero elsewhere; logits are zero for lanes >= P.  One add
            # fuses both results into a single lane-dense output block.
            out_ref[...] = logits + ctx
        else:
            ctx_ref = refs[idx + 1]
            out_ref[...] = logits
            ctx_ref[...] = ctx

    return kernel


# --------------------------------------------------------------------------
# Parameter preparation (done ONCE, outside the per-call hot path)
# --------------------------------------------------------------------------
def prepare_params(params, compute_dtype=jnp.float32):
    """Pre-transpose, lane-pad and dtype-cast the parameters once."""
    layers = params["layers"]                        # list of (W [out,in], b [out])
    wp = jnp.asarray(params["prototype"], jnp.float32)   # (P, F)
    n_prototypes, feat_dim = wp.shape

    dims = [layers[0][0].shape[1]] + [w.shape[0] for (w, _) in layers]
    pad_dims = [_round_up(d, LANE) for d in dims]

    padded_layers = []
    for i, (w, b) in enumerate(layers):
        w = jnp.asarray(w, jnp.float32).T            # (in, out)
        in_d, out_d = w.shape
        in_p, out_p = pad_dims[i], pad_dims[i + 1]
        w = jnp.pad(w, ((0, in_p - in_d), (0, out_p - out_d))).astype(compute_dtype)
        b = jnp.pad(jnp.asarray(b, jnp.float32), (0, out_p - out_d))[None, :]
        padded_layers.append((w, b))

    p_pad = _round_up(n_prototypes, LANE)
    f_pad = pad_dims[-1]
    packed = (n_prototypes + feat_dim) <= LANE       # => p_pad == f_pad == 128

    wp_pad = jnp.pad(wp, ((0, p_pad - n_prototypes), (0, f_pad - feat_dim)))
    # wpT feeds the logits matmul.  NOTE: with compute_dtype=bf16 a near-tie
    # argmax can flip; keep wpT (and the feature chain) in f32 if assignment
    # stability matters more than input-stream bandwidth.
    wpT = wp_pad.T.astype(compute_dtype)             # (F_pad, P_pad)

    if packed:
        # Shift prototype rows right by P lanes so the one-hot gather matmul
        # writes the context directly into lanes [P, P+F) of the packed block.
        wp_gather = jnp.pad(
            wp, ((0, p_pad - n_prototypes),
                 (n_prototypes, LANE - n_prototypes - feat_dim)))
    else:
        wp_gather = wp_pad                            # (P_pad, F_pad)
    # Gather operand stays f32 so returned context rows match wp bit-exactly.

    return {
        "layers": padded_layers,
        "wpT": wpT,
        "wp_gather": wp_gather,
        "packed": packed,
        "dims": dims,
        "pad_dims": pad_dims,
        "n_prototypes": n_prototypes,
        "p_pad": p_pad,
        "feat_dim": feat_dim,
        "f_pad": f_pad,
        "input_size": dims[0],
        "compute_dtype": compute_dtype,
    }


# --------------------------------------------------------------------------
# Forward wrapper
# --------------------------------------------------------------------------
def _choose_batch_tile(B: int, batch_tile: int) -> int:
    """Pick a batch tile (multiple of 8) bounding padded-row waste to ~6%."""
    batch_tile = max(SUBLANE, _round_up(batch_tile, SUBLANE))
    tb = min(batch_tile, _round_up(B, SUBLANE))
    while tb > SUBLANE:
        waste = _round_up(B, tb) - B
        if waste <= max(SUBLANE, 0.06 * B):
            break
        tb = _round_up(tb // 2, SUBLANE)
    return tb


def _batch_dimension_semantics(core_parallel):
    if core_parallel is None:
        try:
            kind = jax.devices()[0].device_kind.lower()
            core_parallel = ("v7" in kind) or ("7x" in kind)
        except Exception:  # pragma: no cover - defensive
            core_parallel = False
    # On v7x, CORE_PARALLEL actually shards the batch grid across the 2 TCs;
    # plain "parallel" is a near-no-op for codegen but harmless elsewhere.
    return (pltpu.CORE_PARALLEL,) if core_parallel else ("parallel",)


def contextnet_v3_forward(x, prepped, *, batch_tile=1024, core_parallel=None):
    """x: (B, ...) array (flattened like torch .view).  Returns (out, context)."""
    compute_dtype = prepped["compute_dtype"]
    n_linear = len(prepped["layers"])
    in_pad = prepped["pad_dims"][0]
    p_pad, f_pad = prepped["p_pad"], prepped["f_pad"]
    n_prototypes, feat_dim = prepped["n_prototypes"], prepped["feat_dim"]
    input_size = prepped["input_size"]
    packed = prepped["packed"]

    x = jnp.asarray(x, jnp.float32)
    if x.ndim > 2:
        x = x.reshape(x.shape[0], -1)                # torch x.view(-1, flat)
    B = x.shape[0]

    # Lane-pad the feature axis, stream in compute_dtype (halves x DMA bytes
    # when bf16), tile + pad the batch axis with bounded waste.
    if in_pad != input_size:
        x = jnp.pad(x, ((0, 0), (0, in_pad - input_size)))
    x = x.astype(compute_dtype)
    tb = _choose_batch_tile(B, batch_tile)
    b_pad = _round_up(B, tb)
    if b_pad != B:
        x = jnp.pad(x, ((0, b_pad - B), (0, 0)))
    grid = (b_pad // tb,)

    # Kernel args: x, (W,b)*n_linear, wpT, wp_gather
    kernel_args = [x]
    for (w, b) in prepped["layers"]:
        kernel_args.append(w)
        kernel_args.append(b)
    kernel_args.append(prepped["wpT"])
    kernel_args.append(prepped["wp_gather"])

    # BlockSpecs: x / outputs stream over the batch grid; weights stay
    # VMEM-resident (constant index_map).  If the MLP is scaled up, switch the
    # weight specs to pipeline_mode=pl.Buffered(1) to halve their footprint.
    in_specs = [pl.BlockSpec((tb, in_pad), lambda i: (i, 0))]
    for (w, b) in prepped["layers"]:
        in_specs.append(pl.BlockSpec(w.shape, lambda i: (0, 0)))
        in_specs.append(pl.BlockSpec(b.shape, lambda i: (0, 0)))
    in_specs.append(pl.BlockSpec(prepped["wpT"].shape, lambda i: (0, 0)))
    in_specs.append(pl.BlockSpec(prepped["wp_gather"].shape, lambda i: (0, 0)))

    if packed:
        out_lanes = LANE
        out_specs = pl.BlockSpec((tb, LANE), lambda i: (i, 0))
        out_shape = jax.ShapeDtypeStruct((b_pad, LANE), jnp.float32)
    else:
        out_lanes = p_pad + f_pad
        out_specs = (pl.BlockSpec((tb, p_pad), lambda i: (i, 0)),
                     pl.BlockSpec((tb, f_pad), lambda i: (i, 0)))
        out_shape = (jax.ShapeDtypeStruct((b_pad, p_pad), jnp.float32),
                     jax.ShapeDtypeStruct((b_pad, f_pad), jnp.float32))

    # VMEM budget: resident weights (x2 default double-buffering) + streamed
    # tiles + activation working set + headroom.
    weight_bytes = 0
    for (w, b) in prepped["layers"]:
        weight_bytes += int(w.size) * w.dtype.itemsize
        weight_bytes += int(b.size) * b.dtype.itemsize
    weight_bytes += int(prepped["wpT"].size) * prepped["wpT"].dtype.itemsize
    weight_bytes += (int(prepped["wp_gather"].size)
                     * prepped["wp_gather"].dtype.itemsize)
    in_itemsize = jnp.dtype(compute_dtype).itemsize
    stream_bytes = 2 * tb * (in_pad * in_itemsize + out_lanes * 4)
    act_bytes = 4 * tb * max(prepped["pad_dims"] + [p_pad]) * 4
    vmem_limit = 2 * weight_bytes + stream_bytes + act_bytes + (8 << 20)
    vmem_limit = int(max(16 << 20, min(vmem_limit, 64 << 20)))

    # Cost hint for the surrounding XLA schedule.
    dims = prepped["dims"]
    flops = 2 * B * (sum(dims[i] * dims[i + 1] for i in range(n_linear))
                     + 2 * feat_dim * n_prototypes)
    bytes_accessed = (b_pad * in_pad * in_itemsize + b_pad * out_lanes * 4
                      + weight_bytes)
    cost = pl.CostEstimate(flops=int(flops), transcendentals=0,
                           bytes_accessed=int(bytes_accessed))

    kernel = _make_contextnet_kernel(n_linear, n_prototypes, packed,
                                     compute_dtype)

    result = pl.pallas_call(
        kernel,
        grid=grid,
        in_specs=in_specs,
        out_specs=out_specs,
        out_shape=out_shape,
        compiler_params=pltpu.CompilerParams(
            dimension_semantics=_batch_dimension_semantics(core_parallel),
            vmem_limit_bytes=vmem_limit,
        ),
        cost_estimate=cost,
    )(*kernel_args)

    # NOTE: these slices are not views (extra HBM copy); if the consumer is
    # jitted, prefer fusing the slice there or accepting the packed output.
    if packed:
        out = result[:B, :n_prototypes]
        context = result[:B, n_prototypes:n_prototypes + feat_dim]
        return out, context
    out, context = result
    return out[:B, :n_prototypes], context[:B, :feat_dim]


# --------------------------------------------------------------------------
# Init + pure-JAX reference
# --------------------------------------------------------------------------
def _xavier_uniform(key, fan_out, fan_in):
    bound = math.sqrt(6.0 / (fan_in + fan_out))
    return jax.random.uniform(key, (fan_out, fan_in), jnp.float32,
                              minval=-bound, maxval=bound)


def init_params(key, input_size, hidden_params, feat_dim, n_prototypes):
    layers = []
    in_dim = input_size
    for out_dim in list(hidden_params) + [feat_dim]:
        key, wk = jax.random.split(key)
        layers.append((_xavier_uniform(wk, out_dim, in_dim),
                       jnp.zeros((out_dim,), jnp.float32)))
        in_dim = out_dim
    key, pk = jax.random.split(key)
    wp = _xavier_uniform(pk, n_prototypes, feat_dim)
    return {"layers": layers, "prototype": wp}


def _reference_forward(x, params):
    h = x
    n_hidden = len(params["layers"]) - 1
    for i, (w, b) in enumerate(params["layers"]):
        h = h @ w.T + b
        if i < n_hidden:
            h = jnp.maximum(h, 0.0)
    wp = params["prototype"]
    out = h @ wp.T
    assignment = jnp.argmax(out, axis=1)
    context = wp[assignment]
    return out, context


if __name__ == "__main__":
    # Small config: 4x4x4 inputs flattened to 64, two hidden layers of 32,
    # feat_dim 16, 8 prototypes, batch 10 (exercises batch padding + slicing).
    B, C, H, W = 10, 4, 4, 4
    input_size = C * H * W
    hidden_params = (32, 32)
    feat_dim = 16
    n_prototypes = 8

    key = jax.random.PRNGKey(0)
    key, xk = jax.random.split(key)
    x_img = jax.random.normal(xk, (B, C, H, W), jnp.float32)
    x_flat = x_img.reshape(B, input_size)

    params = init_params(key, input_size, hidden_params, feat_dim, n_prototypes)
    ref_out, ref_ctx = _reference_forward(x_flat, params)

    # f32 path: tight numerics.
    prepped = prepare_params(params, compute_dtype=jnp.float32)
    out, context = contextnet_v3_forward(x_img, prepped)
    out = jax.block_until_ready(out)
    context = jax.block_until_ready(context)
    assert out.shape == (B, n_prototypes) and context.shape == (B, feat_dim)
    assert jnp.allclose(out, ref_out, atol=1e-4, rtol=1e-5)
    assert jnp.allclose(context, ref_ctx, atol=1e-4, rtol=1e-5)

    # bf16 streaming/compute smoke pass (recommended on v6e/v7x): loose
    # tolerances only, since bf16 rounding can flip a near-tie argmax (which
    # changes the returned context row discontinuously).
    prepped_bf16 = prepare_params(params, compute_dtype=jnp.bfloat16)
    out16, ctx16 = contextnet_v3_forward(x_img, prepped_bf16)
    out16 = jax.block_until_ready(out16)
    ctx16 = jax.block_until_ready(ctx16)
    assert out16.shape == (B, n_prototypes) and ctx16.shape == (B, feat_dim)
    assert bool(jnp.all(jnp.isfinite(out16))) and bool(jnp.all(jnp.isfinite(ctx16)))
    assert jnp.allclose(out16, ref_out, atol=1e-1, rtol=1e-1)

    print("KERNEL_OK")
</pallas_src>

<mosaic_0001>
module attributes {stable_mosaic.version = 11 : i64} {
  func.func @kernel(%arg0: i32, %arg1: memref<16x128xf32, #tpu.memory_space<vmem>>, %arg2: memref<128x128xf32, #tpu.memory_space<vmem>>, %arg3: memref<1x128xf32, #tpu.memory_space<vmem>>, %arg4: memref<128x128xf32, #tpu.memory_space<vmem>>, %arg5: memref<1x128xf32, #tpu.memory_space<vmem>>, %arg6: memref<128x128xf32, #tpu.memory_space<vmem>>, %arg7: memref<1x128xf32, #tpu.memory_space<vmem>>, %arg8: memref<128x128xf32, #tpu.memory_space<vmem>>, %arg9: memref<128x128xf32, #tpu.memory_space<vmem>>, %arg10: memref<16x128xf32, #tpu.memory_space<vmem>>) attributes {dimension_semantics = [#tpu.dimension_semantics<parallel>], iteration_bounds = array<i64: 1>, scalar_prefetch = 0 : i64, scratch_operands = 0 : i64, tpu.core_type = #tpu.core_type<tc>, window_params = [{transform_indices = @transform_0, window_bounds = array<i64: 16, 128>}, {pipeline_mode = #tpu.pipeline_mode<synchronous>, transform_indices = @transform_1, window_bounds = array<i64: 128, 128>}, {pipeline_mode = #tpu.pipeline_mode<synchronous>, transform_indices = @transform_2, window_bounds = array<i64: 1, 128>}, {pipeline_mode = #tpu.pipeline_mode<synchronous>, transform_indices = @transform_3, window_bounds = array<i64: 128, 128>}, {pipeline_mode = #tpu.pipeline_mode<synchronous>, transform_indices = @transform_4, window_bounds = array<i64: 1, 128>}, {pipeline_mode = #tpu.pipeline_mode<synchronous>, transform_indices = @transform_5, window_bounds = array<i64: 128, 128>}, {pipeline_mode = #tpu.pipeline_mode<synchronous>, transform_indices = @transform_6, window_bounds = array<i64: 1, 128>}, {pipeline_mode = #tpu.pipeline_mode<synchronous>, transform_indices = @transform_7, window_bounds = array<i64: 128, 128>}, {pipeline_mode = #tpu.pipeline_mode<synchronous>, transform_indices = @transform_8, window_bounds = array<i64: 128, 128>}, {transform_indices = @transform_9, window_bounds = array<i64: 16, 128>}]} {
    %c0 = arith.constant 0 : index
    %c0_0 = arith.constant 0 : index
    %0 = vector.load %arg1[%c0, %c0_0] : memref<16x128xf32, #tpu.memory_space<vmem>>, vector<16x128xf32>
    %c0_1 = arith.constant 0 : index
    %c0_2 = arith.constant 0 : index
    %1 = vector.load %arg2[%c0_1, %c0_2] : memref<128x128xf32, #tpu.memory_space<vmem>>, vector<128x128xf32>
    %c0_3 = arith.constant 0 : index
    %c0_4 = arith.constant 0 : index
    %2 = vector.load %arg3[%c0_3, %c0_4] : memref<1x128xf32, #tpu.memory_space<vmem>>, vector<1x128xf32>
    %cst = arith.constant dense<0.000000e+00> : vector<16x128xf32>
    %3 = tpu.matmul %0, %1, %cst {dimension_numbers = #tpu.dot_dimension_numbers<[1], [0], [0], [1], [0, 0, 1, 1], [], []>} : vector<16x128xf32>, vector<128x128xf32>, vector<16x128xf32> -> vector<16x128xf32>
    %4 = vector.broadcast %2 : vector<1x128xf32> to vector<16x128xf32>
    %5 = arith.addf %3, %4 : vector<16x128xf32>
    %cst_5 = arith.constant 0.000000e+00 : f32
    %6 = vector.broadcast %cst_5 : f32 to vector<16x128xf32>
    %7 = arith.maximumf %5, %6 : vector<16x128xf32>
    %c0_6 = arith.constant 0 : index
    %c0_7 = arith.constant 0 : index
    %8 = vector.load %arg4[%c0_6, %c0_7] : memref<128x128xf32, #tpu.memory_space<vmem>>, vector<128x128xf32>
    %c0_8 = arith.constant 0 : index
    %c0_9 = arith.constant 0 : index
    %9 = vector.load %arg5[%c0_8, %c0_9] : memref<1x128xf32, #tpu.memory_space<vmem>>, vector<1x128xf32>
    %cst_10 = arith.constant dense<0.000000e+00> : vector<16x128xf32>
    %10 = tpu.matmul %7, %8, %cst_10 {dimension_numbers = #tpu.dot_dimension_numbers<[1], [0], [0], [1], [0, 0, 1, 1], [], []>} : vector<16x128xf32>, vector<128x128xf32>, vector<16x128xf32> -> vector<16x128xf32>
    %11 = vector.broadcast %9 : vector<1x128xf32> to vector<16x128xf32>
    %12 = arith.addf %10, %11 : vector<16x128xf32>
    %cst_11 = arith.constant 0.000000e+00 : f32
    %13 = vector.broadcast %cst_11 : f32 to vector<16x128xf32>
    %14 = arith.maximumf %12, %13 : vector<16x128xf32>
    %c0_12 = arith.constant 0 : index
    %c0_13 = arith.constant 0 : index
    %15 = vector.load %arg6[%c0_12, %c0_13] : memref<128x128xf32, #tpu.memory_space<vmem>>, vector<128x128xf32>
    %c0_14 = arith.constant 0 : index
    %c0_15 = arith.constant 0 : index
    %16 = vector.load %arg7[%c0_14, %c0_15] : memref<1x128xf32, #tpu.memory_space<vmem>>, vector<1x128xf32>
    %cst_16 = arith.constant dense<0.000000e+00> : vector<16x128xf32>
    %17 = tpu.matmul %14, %15, %cst_16 {dimension_numbers = #tpu.dot_dimension_numbers<[1], [0], [0], [1], [0, 0, 1, 1], [], []>} : vector<16x128xf32>, vector<128x128xf32>, vector<16x128xf32> -> vector<16x128xf32>
    %18 = vector.broadcast %16 : vector<1x128xf32> to vector<16x128xf32>
    %19 = arith.addf %17, %18 : vector<16x128xf32>
    %c0_17 = arith.constant 0 : index
    %c0_18 = arith.constant 0 : index
    %20 = vector.load %arg8[%c0_17, %c0_18] : memref<128x128xf32, #tpu.memory_space<vmem>>, vector<128x128xf32>
    %c0_19 = arith.constant 0 : index
    %c0_20 = arith.constant 0 : index
    %21 = vector.load %arg9[%c0_19, %c0_20] : memref<128x128xf32, #tpu.memory_space<vmem>>, vector<128x128xf32>
    %cst_21 = arith.constant dense<0.000000e+00> : vector<16x128xf32>
    %22 = tpu.matmul %19, %20, %cst_21 {dimension_numbers = #tpu.dot_dimension_numbers<[1], [0], [0], [1], [0, 0, 1, 1], [], []>} : vector<16x128xf32>, vector<128x128xf32>, vector<16x128xf32> -> vector<16x128xf32>
    %23 = tpu.iota {dimensions = array<i32: 1>} : vector<16x128xi32>
    %c8_i32 = arith.constant 8 : i32
    %24 = vector.broadcast %c8_i32 : i32 to vector<16x128xi32>
    %25 = arith.cmpi slt, %23, %24 : vector<16x128xi32>
    %cst_22 = arith.constant 0xFF800000 : f32
    %26 = vector.broadcast %cst_22 : f32 to vector<16x128xf32>
    %27 = arith.select %25, %22, %26 : vector<16x128xi1>, vector<16x128xf32>
    %cst_23 = arith.constant dense<0xFF800000> : vector<16xf32>
    %28 = vector.multi_reduction <maximumf>, %27, %cst_23 [1] : vector<16x128xf32> to vector<16xf32>
    %29 = vector.shape_cast %28 : vector<16xf32> to vector<16x1xf32>
    %30 = vector.broadcast %29 : vector<16x1xf32> to vector<16x128xf32>
    %31 = arith.cmpf oeq, %27, %30 : vector<16x128xf32>
    %32 = arith.andi %31, %25 : vector<16x128xi1>
    %c128_i32 = arith.constant 128 : i32
    %33 = vector.broadcast %c128_i32 : i32 to vector<16x128xi32>
    %34 = arith.select %32, %23, %33 : vector<16x128xi1>, vector<16x128xi32>
    %cst_24 = arith.constant dense<2147483647> : vector<16xi32>
    %35 = vector.multi_reduction <minsi>, %34, %cst_24 [1] : vector<16x128xi32> to vector<16xi32>
    %36 = vector.shape_cast %35 : vector<16xi32> to vector<16x1xi32>
    %37 = vector.broadcast %36 : vector<16x1xi32> to vector<16x128xi32>
    %38 = arith.cmpi eq, %23, %37 : vector<16x128xi32>
    %39 = arith.extui %38 : vector<16x128xi1> to vector<16x128xi32>
    %40 = arith.sitofp %39 : vector<16x128xi32> to vector<16x128xf32>
    %cst_25 = arith.constant dense<0.000000e+00> : vector<16x128xf32>
    %41 = tpu.matmul %40, %21, %cst_25 {dimension_numbers = #tpu.dot_dimension_numbers<[1], [0], [0], [1], [0, 0, 1, 1], [], []>} : vector<16x128xf32>, vector<128x128xf32>, vector<16x128xf32> -> vector<16x128xf32>
    %42 = arith.addf %22, %41 : vector<16x128xf32>
    %c0_26 = arith.constant 0 : index
    %c0_27 = arith.constant 0 : index
    %43 = vector.load %arg10[%c0_26, %c0_27] : memref<16x128xf32, #tpu.memory_space<vmem>>, vector<16x128xf32>
    tpu.vector_store %arg10[%c0_26, %c0_27], %42 {strides = array<i32>} : memref<16x128xf32, #tpu.memory_space<vmem>>, vector<16x128xf32>,
    return
  }
  func.func @transform_0(%arg0: i32) -> (i32, i32) {
    %c0_i32 = arith.constant 0 : i32
    %c0_i32_0 = arith.constant 0 : i32
    return %arg0, %c0_i32 : i32, i32
  }
  func.func @transform_1(%arg0: i32) -> (i32, i32) {
    %c0_i32 = arith.constant 0 : i32
    %c0_i32_0 = arith.constant 0 : i32
    %c0_i32_1 = arith.constant 0 : i32
    return %c0_i32, %c0_i32_0 : i32, i32
  }
  func.func @transform_2(%arg0: i32) -> (i32, i32) {
    %c0_i32 = arith.constant 0 : i32
    %c0_i32_0 = arith.constant 0 : i32
    %c0_i32_1 = arith.constant 0 : i32
    return %c0_i32, %c0_i32_0 : i32, i32
  }
  func.func @transform_3(%arg0: i32) -> (i32, i32) {
    %c0_i32 = arith.constant 0 : i32
    %c0_i32_0 = arith.constant 0 : i32
    %c0_i32_1 = arith.constant 0 : i32
    return %c0_i32, %c0_i32_0 : i32, i32
  }
  func.func @transform_4(%arg0: i32) -> (i32, i32) {
    %c0_i32 = arith.constant 0 : i32
    %c0_i32_0 = arith.constant 0 : i32
    %c0_i32_1 = arith.constant 0 : i32
    return %c0_i32, %c0_i32_0 : i32, i32
  }
  func.func @transform_5(%arg0: i32) -> (i32, i32) {
    %c0_i32 = arith.constant 0 : i32
    %c0_i32_0 = arith.constant 0 : i32
    %c0_i32_1 = arith.constant 0 : i32
    return %c0_i32, %c0_i32_0 : i32, i32
  }
  func.func @transform_6(%arg0: i32) -> (i32, i32) {
    %c0_i32 = arith.constant 0 : i32
    %c0_i32_0 = arith.constant 0 : i32
    %c0_i32_1 = arith.constant 0 : i32
    return %c0_i32, %c0_i32_0 : i32, i32
  }
  func.func @transform_7(%arg0: i32) -> (i32, i32) {
    %c0_i32 = arith.constant 0 : i32
    %c0_i32_0 = arith.constant 0 : i32
    %c0_i32_1 = arith.constant 0 : i32
    return %c0_i32, %c0_i32_0 : i32, i32
  }
  func.func @transform_8(%arg0: i32) -> (i32, i32) {
    %c0_i32 = arith.constant 0 : i32
    %c0_i32_0 = arith.constant 0 : i32
    %c0_i32_1 = arith.constant 0 : i32
    return %c0_i32, %c0_i32_0 : i32, i32
  }
  func.func @transform_9(%arg0: i32) -> (i32, i32) {
    %c0_i32 = arith.constant 0 : i32
    %c0_i32_0 = arith.constant 0 : i32
    return %arg0, %c0_i32 : i32, i32
  }
}

</mosaic_0001>

<llo_original>
// kernel: tpu_custom_call.1
$region0: #{tpu_custom_call.1}
  #allocation0 [shape = 'u32[]', space=smem, size = 0x4, offset = 0x4, fixed_abs, tag = 'smem constant byte address 0x4 - core index']
  #allocation1 [shape = 'u32[72,128]{1,0:T(1,128)}', space=vmem, size = 0x9000, scoped, tag = 'internal scratch']
  %s0 = inlined_call_operand.hbm [shape: f32[16,128], index: 0, kind: input, shape index: {}]
  %s1 = inlined_call_operand.hbm [shape: f32[128,128], index: 1, kind: input, shape index: {}]
  %s2 = inlined_call_operand.vmem [shape: f32[1,128], index: 2, kind: input, shape index: {}]
  %s3 = inlined_call_operand.hbm [shape: f32[128,128], index: 3, kind: input, shape index: {}]
  %s4 = inlined_call_operand.vmem [shape: f32[1,128], index: 4, kind: input, shape index: {}]
  %s5 = inlined_call_operand.hbm [shape: f32[128,128], index: 5, kind: input, shape index: {}]
  %s6 = inlined_call_operand.vmem [shape: f32[1,128], index: 6, kind: input, shape index: {}]
  %s7 = inlined_call_operand.hbm [shape: f32[128,128], index: 7, kind: input, shape index: {}]
  %s8 = inlined_call_operand.hbm [shape: f32[128,128], index: 8, kind: input, shape index: {}]
  %s9 = inlined_call_operand.hbm [shape: f32[16,128], index: 9, kind: output, shape index: {}]
  %s10 = sld [smem:[#allocation0]]
  $region70: #{tpu_custom_call.1} parent=0
    _
  %s12 = ssub.s32 1, %s10
  %s13 = scalar_select 0, %s12, %s10
  $region1: #{tpu_custom_call.1} parent=0
    #allocation2 [shape = 'u8[8192]{0}', space=vmem, size = 0x2000, scoped, tag = 'input window, operand 0, single buffered']
    #allocation3 [shape = 's32[1]{0}', space=sflag, size = 0x4, scoped, tag = 'scoped memory for tpu_custom_call.1']
    #allocation4 [shape = 's32[1]{0}', space=sflag, size = 0x4, scoped, tag = 'scoped memory for tpu_custom_call.1']
    #allocation5 [shape = 'u8[65536]{0}', space=vmem, size = 0x10000, scoped, tag = 'input window, operand 1, single buffered']
    #allocation6 [shape = 's32[1]{0}', space=sflag, size = 0x4, scoped, tag = 'scoped memory for tpu_custom_call.1']
    #allocation7 [shape = 'u8[65536]{0}', space=vmem, size = 0x10000, scoped, tag = 'input window, operand 3, single buffered']
    #allocation8 [shape = 'u8[65536]{0}', space=vmem, size = 0x10000, scoped, tag = 'input window, operand 5, single buffered']
    #allocation9 [shape = 's32[1]{0}', space=sflag, size = 0x4, scoped, tag = 'scoped memory for tpu_custom_call.1']
    #allocation10 [shape = 'u8[65536]{0}', space=vmem, size = 0x10000, scoped, tag = 'input window, operand 7, single buffered']
    #allocation11 [shape = 'u8[65536]{0}', space=vmem, size = 0x10000, scoped, tag = 'input window, operand 8, single buffered']
    #allocation12 [shape = 's32[1]{0}', space=sflag, size = 0x4, scoped, tag = 'scoped memory for tpu_custom_call.1']
    #allocation13 [shape = 'u8[8192]{0}', space=vmem, size = 0x2000, scoped, tag = 'output window, operand 0, single buffered']
    %14 = vsyncpa [#allocation3], 0
    %15 = vsyncpa [#allocation6], 0
    %16 = vsyncpa [#allocation9], 0
    %17 = vsyncpa [#allocation12], 0
    %18 = vsyncpa [#allocation4], 0
    // Predicated region
    $region2: #{tpu_custom_call.1} parent=1 // pred_check
      _
    $region3: #{tpu_custom_call.1} parent=1 // pred_check_branch
      %20 = sbr.rel (0) target = $region5
    $region4: #{tpu_custom_call.1} parent=1 // pred_region
      %22 = vsyncadd [#allocation3], 0
      %s23 = sshll.u32 %s0, 4
      %s24 = int_to_ptr.hbm [resolvable:$true] %s23
      %s25 = sshll.u32 [#allocation2], 4
      %s26 = int_to_ptr.vmem [resolvable:$true] %s25
      %31 = dma.hbm_to_vmem [thread:$0]  %s24, 256, %s26, [#allocation3], 128, 128, 8
    $region5: #{tpu_custom_call.1} parent=1 // pred_fallthru
      _
    // Predicated region
    $region6: #{tpu_custom_call.1} parent=1 // pred_check
      _
    $region7: #{tpu_custom_call.1} parent=1 // pred_check_branch
      %33 = sbr.rel (0) target = $region9
    $region8: #{tpu_custom_call.1} parent=1 // pred_region
      %35 = vsyncadd [#allocation6], 0
      %s36 = sshll.u32 %s1, 4
      %s37 = int_to_ptr.hbm [resolvable:$true] %s36
      %s38 = sshll.u32 [#allocation5], 4
      %s39 = int_to_ptr.vmem [resolvable:$true] %s38
      %44 = dma.hbm_to_vmem [thread:$0]  %s37, 2048, %s39, [#allocation6], 128, 128, 8
    $region9: #{tpu_custom_call.1} parent=1 // pred_fallthru
      _
    // Predicated region
    $region10: #{tpu_custom_call.1} parent=1 // pred_check
      _
    $region11: #{tpu_custom_call.1} parent=1 // pred_check_branch
      %46 = sbr.rel (0) target = $region13
    $region12: #{tpu_custom_call.1} parent=1 // pred_region
      _
    $region13: #{tpu_custom_call.1} parent=1 // pred_fallthru
      _
    // Predicated region
    $region14: #{tpu_custom_call.1} parent=1 // pred_check
      _
    $region15: #{tpu_custom_call.1} parent=1 // pred_check_branch
      %48 = sbr.rel (0) target = $region17
    $region16: #{tpu_custom_call.1} parent=1 // pred_region
      %50 = vsyncadd [#allocation6], 0
      %s51 = sshll.u32 %s3, 4
      %s52 = int_to_ptr.hbm [resolvable:$true] %s51
      %s53 = sshll.u32 [#allocation7], 4
      %s54 = int_to_ptr.vmem [resolvable:$true] %s53
      %59 = dma.hbm_to_vmem [thread:$0]  %s52, 2048, %s54, [#allocation6], 128, 128, 8
    $region17: #{tpu_custom_call.1} parent=1 // pred_fallthru
      _
    // Predicated region
    $region18: #{tpu_custom_call.1} parent=1 // pred_check
      _
    $region19: #{tpu_custom_call.1} parent=1 // pred_check_branch
      %61 = sbr.rel (0) target = $region21
    $region20: #{tpu_custom_call.1} parent=1 // pred_region
      _
    $region21: #{tpu_custom_call.1} parent=1 // pred_fallthru
      _
    // Predicated region
    $region22: #{tpu_custom_call.1} parent=1 // pred_check
      _
    $region23: #{tpu_custom_call.1} parent=1 // pred_check_branch
      %63 = sbr.rel (0) target = $region25
    $region24: #{tpu_custom_call.1} parent=1 // pred_region
      %65 = vsyncadd [#allocation9], 0
      %s66 = sshll.u32 %s5, 4
      %s67 = int_to_ptr.hbm [resolvable:$true] %s66
      %s68 = sshll.u32 [#allocation8], 4
      %s69 = int_to_ptr.vmem [resolvable:$true] %s68
      %74 = dma.hbm_to_vmem [thread:$0]  %s67, 2048, %s69, [#allocation9], 128, 128, 8
    $region25: #{tpu_custom_call.1} parent=1 // pred_fallthru
      _
    // Predicated region
    $region26: #{tpu_custom_call.1} parent=1 // pred_check
      _
    $region27: #{tpu_custom_call.1} parent=1 // pred_check_branch
      %76 = sbr.rel (0) target = $region29
    $region28: #{tpu_custom_call.1} parent=1 // pred_region
      _
    $region29: #{tpu_custom_call.1} parent=1 // pred_fallthru
      _
    // Predicated region
    $region30: #{tpu_custom_call.1} parent=1 // pred_check
      _
    $region31: #{tpu_custom_call.1} parent=1 // pred_check_branch
      %78 = sbr.rel (0) target = $region33
    $region32: #{tpu_custom_call.1} parent=1 // pred_region
      %80 = vsyncadd [#allocation9], 0
      %s81 = sshll.u32 %s7, 4
      %s82 = int_to_ptr.hbm [resolvable:$true] %s81
      %s83 = sshll.u32 [#allocation10], 4
      %s84 = int_to_ptr.vmem [resolvable:$true] %s83
      %89 = dma.hbm_to_vmem [thread:$0]  %s82, 2048, %s84, [#allocation9], 128, 128, 8
    $region33: #{tpu_custom_call.1} parent=1 // pred_fallthru
      _
    // Predicated region
    $region34: #{tpu_custom_call.1} parent=1 // pred_check
      _
    $region35: #{tpu_custom_call.1} parent=1 // pred_check_branch
      %91 = sbr.rel (0) target = $region37
    $region36: #{tpu_custom_call.1} parent=1 // pred_region
      %93 = vsyncadd [#allocation12], 0
      %s94 = sshll.u32 %s8, 4
      %s95 = int_to_ptr.hbm [resolvable:$true] %s94
      %s96 = sshll.u32 [#allocation11], 4
      %s97 = int_to_ptr.vmem [resolvable:$true] %s96
      %102 = dma.hbm_to_vmem [thread:$0]  %s95, 2048, %s97, [#allocation12], 128, 128, 8
    $region37: #{tpu_custom_call.1} parent=1 // pred_fallthru
      _
    // Predicated region
    $region38: #{tpu_custom_call.1} parent=1 // pred_check
      _
    $region39: #{tpu_custom_call.1} parent=1 // pred_check_branch
      %104 = sbr.rel (0) target = $region41
    $region40: #{tpu_custom_call.1} parent=1 // pred_region
      %106 = dma.done [#allocation3], 256
    $region41: #{tpu_custom_call.1} parent=1 // pred_fallthru
      _
    // Predicated region
    $region42: #{tpu_custom_call.1} parent=1 // pred_check
      _
    $region43: #{tpu_custom_call.1} parent=1 // pred_check_branch
      %108 = sbr.rel (0) target = $region45
    $region44: #{tpu_custom_call.1} parent=1 // pred_region
      %110 = dma.done [#allocation6], 2048
    $region45: #{tpu_custom_call.1} parent=1 // pred_fallthru
      _
    // Predicated region
    $region46: #{tpu_custom_call.1} parent=1 // pred_check
      _
    $region47: #{tpu_custom_call.1} parent=1 // pred_check_branch
      %112 = sbr.rel (0) target = $region49
    $region48: #{tpu_custom_call.1} parent=1 // pred_region
      %114 = dma.done [#allocation6], 2048
    $region49: #{tpu_custom_call.1} parent=1 // pred_fallthru
      _
    // Predicated region
    $region50: #{tpu_custom_call.1} parent=1 // pred_check
      _
    $region51: #{tpu_custom_call.1} parent=1 // pred_check_branch
      %116 = sbr.rel (0) target = $region53
    $region52: #{tpu_custom_call.1} parent=1 // pred_region
      %118 = dma.done [#allocation9], 2048
    $region53: #{tpu_custom_call.1} parent=1 // pred_fallthru
      _
    // Predicated region
    $region54: #{tpu_custom_call.1} parent=1 // pred_check
      _
    $region55: #{tpu_custom_call.1} parent=1 // pred_check_branch
      %120 = sbr.rel (0) target = $region57
    $region56: #{tpu_custom_call.1} parent=1 // pred_region
      %122 = dma.done [#allocation9], 2048
    $region57: #{tpu_custom_call.1} parent=1 // pred_fallthru
      _
    // Predicated region
    $region58: #{tpu_custom_call.1} parent=1 // pred_check
      _
    $region59: #{tpu_custom_call.1} parent=1 // pred_check_branch
      %124 = sbr.rel (0) target = $region61
    $region60: #{tpu_custom_call.1} parent=1 // pred_region
      %126 = dma.done [#allocation12], 2048
    $region61: #{tpu_custom_call.1} parent=1 // pred_fallthru
      _
    %v127 = vld [vmem:[#allocation2] sm:$0xff]
    %v128 = vld [vmem:[#allocation2 + $0x8] sm:$0xff]
    %v129 = vld [vmem:[#allocation5] sm:$0xff]
    %v130 = vld [vmem:[#allocation5 + $0x8] sm:$0xff]
    %v131 = vld [vmem:[#allocation5 + $0x10] sm:$0xff]
    %v132 = vld [vmem:[#allocation5 + $0x18] sm:$0xff]
    %v133 = vld [vmem:[#allocation5 + $0x20] sm:$0xff]
    %v134 = vld [vmem:[#allocation5 + $0x28] sm:$0xff]
    %v135 = vld [vmem:[#allocation5 + $0x30] sm:$0xff]
    %v136 = vld [vmem:[#allocation5 + $0x38] sm:$0xff]
    %v137 = vld [vmem:[#allocation5 + $0x40] sm:$0xff]
    %v138 = vld [vmem:[#allocation5 + $0x48] sm:$0xff]
    %v139 = vld [vmem:[#allocation5 + $0x50] sm:$0xff]
    %v140 = vld [vmem:[#allocation5 + $0x58] sm:$0xff]
    %v141 = vld [vmem:[#allocation5 + $0x60] sm:$0xff]
    %v142 = vld [vmem:[#allocation5 + $0x68] sm:$0xff]
    %v143 = vld [vmem:[#allocation5 + $0x70] sm:$0xff]
    %v144 = vld [vmem:[#allocation5 + $0x78] sm:$0xff]
    %v145 = vld [vmem:[%s2] sm:$0x1]
    %v147 = vperm.slane %v145, 0
    %149 = vmatpush.msra.mxu0 %v144
    %150 = vmatpush.msra.mxu0 %v143
    %151 = vmatpush.msra.mxu0 %v142
    %152 = vmatpush.msra.mxu0 %v141
    %153 = vmatpush.msra.mxu0 %v140
    %154 = vmatpush.msra.mxu0 %v139
    %155 = vmatpush.msra.mxu0 %v138
    %156 = vmatpush.msra.mxu0 %v137
    %157 = vmatpush.msra.mxu0 %v136
    %158 = vmatpush.msra.mxu0 %v135
    %159 = vmatpush.msra.mxu0 %v134
    %160 = vmatpush.msra.mxu0 %v133
    %161 = vmatpush.msra.mxu0 %v132
    %162 = vmatpush.msra.mxu0 %v131
    %163 = vmatpush.msra.mxu0 %v130
    %164 = vmatpush.msra.mxu0 %v129
    %165 = vmatmul.f32.gmra.mxu0 %v127
    %v166 = vpop.f32.mrf.mxu0
    %v167 = vadd.f32 %v147, %v166
    %168 = vmatmul.f32.gmra.mxu0 %v128
    %v169 = vpop.f32.mrf.mxu0
    %v170 = vadd.f32 %v147, %v169
    %171 = vdwg.mxu0
    %v172 = vmax.f32 %v167, 0.0
    %v173 = vmax.f32 %v170, 0.0
    %v174 = vld [vmem:[#allocation7] sm:$0xff]
    %v175 = vld [vmem:[#allocation7 + $0x8] sm:$0xff]
    %v176 = vld [vmem:[#allocation7 + $0x10] sm:$0xff]
    %v177 = vld [vmem:[#allocation7 + $0x18] sm:$0xff]
    %v178 = vld [vmem:[#allocation7 + $0x20] sm:$0xff]
    %v179 = vld [vmem:[#allocation7 + $0x28] sm:$0xff]
    %v180 = vld [vmem:[#allocation7 + $0x30] sm:$0xff]
    %v181 = vld [vmem:[#allocation7 + $0x38] sm:$0xff]
    %v182 = vld [vmem:[#allocation7 + $0x40] sm:$0xff]
    %v183 = vld [vmem:[#allocation7 + $0x48] sm:$0xff]
    %v184 = vld [vmem:[#allocation7 + $0x50] sm:$0xff]
    %v185 = vld [vmem:[#allocation7 + $0x58] sm:$0xff]
    %v186 = vld [vmem:[#allocation7 + $0x60] sm:$0xff]
    %v187 = vld [vmem:[#allocation7 + $0x68] sm:$0xff]
    %v188 = vld [vmem:[#allocation7 + $0x70] sm:$0xff]
    %v189 = vld [vmem:[#allocation7 + $0x78] sm:$0xff]
    %v190 = vld [vmem:[%s4] sm:$0x1]
    %v192 = vperm.slane %v190, 0
    %194 = vmatpush.msra.mxu0 %v189
    %195 = vmatpush.msra.mxu0 %v188
    %196 = vmatpush.msra.mxu0 %v187
    %197 = vmatpush.msra.mxu0 %v186
    %198 = vmatpush.msra.mxu0 %v185
    %199 = vmatpush.msra.mxu0 %v184
    %200 = vmatpush.msra.mxu0 %v183
    %201 = vmatpush.msra.mxu0 %v182
    %202 = vmatpush.msra.mxu0 %v181
    %203 = vmatpush.msra.mxu0 %v180
    %204 = vmatpush.msra.mxu0 %v179
    %205 = vmatpush.msra.mxu0 %v178
    %206 = vmatpush.msra.mxu0 %v177
    %207 = vmatpush.msra.mxu0 %v176
    %208 = vmatpush.msra.mxu0 %v175
    %209 = vmatpush.msra.mxu0 %v174
    %210 = vmatmul.f32.gmra.mxu0 %v172
    %v211 = vpop.f32.mrf.mxu0
    %v212 = vadd.f32 %v192, %v211
    %213 = vmatmul.f32.gmra.mxu0 %v173
    %v214 = vpop.f32.mrf.mxu0
    %v215 = vadd.f32 %v192, %v214
    %216 = vdwg.mxu0
    %v217 = vmax.f32 %v212, 0.0
    %v218 = vmax.f32 %v215, 0.0
    %v219 = vld [vmem:[#allocation8] sm:$0xff]
    %v220 = vld [vmem:[#allocation8 + $0x8] sm:$0xff]
    %v221 = vld [vmem:[#allocation8 + $0x10] sm:$0xff]
    %v222 = vld [vmem:[#allocation8 + $0x18] sm:$0xff]
    %v223 = vld [vmem:[#allocation8 + $0x20] sm:$0xff]
    %v224 = vld [vmem:[#allocation8 + $0x28] sm:$0xff]
    %v225 = vld [vmem:[#allocation8 + $0x30] sm:$0xff]
    %v226 = vld [vmem:[#allocation8 + $0x38] sm:$0xff]
    %v227 = vld [vmem:[#allocation8 + $0x40] sm:$0xff]
    %v228 = vld [vmem:[#allocation8 + $0x48] sm:$0xff]
    %v229 = vld [vmem:[#allocation8 + $0x50] sm:$0xff]
    %v230 = vld [vmem:[#allocation8 + $0x58] sm:$0xff]
    %v231 = vld [vmem:[#allocation8 + $0x60] sm:$0xff]
    %v232 = vld [vmem:[#allocation8 + $0x68] sm:$0xff]
    %v233 = vld [vmem:[#allocation8 + $0x70] sm:$0xff]
    %v234 = vld [vmem:[#allocation8 + $0x78] sm:$0xff]
    %v235 = vld [vmem:[%s6] sm:$0x1]
    %v237 = vperm.slane %v235, 0
    %239 = vmatpush.msra.mxu0 %v234
    %240 = vmatpush.msra.mxu0 %v233
    %241 = vmatpush.msra.mxu0 %v232
    %242 = vmatpush.msra.mxu0 %v231
    %243 = vmatpush.msra.mxu0 %v230
    %244 = vmatpush.msra.mxu0 %v229
    %245 = vmatpush.msra.mxu0 %v228
    %246 = vmatpush.msra.mxu0 %v227
    %247 = vmatpush.msra.mxu0 %v226
    %248 = vmatpush.msra.mxu0 %v225
    %249 = vmatpush.msra.mxu0 %v224
    %250 = vmatpush.msra.mxu0 %v223
    %251 = vmatpush.msra.mxu0 %v222
    %252 = vmatpush.msra.mxu0 %v221
    %253 = vmatpush.msra.mxu0 %v220
    %254 = vmatpush.msra.mxu0 %v219
    %255 = vmatmul.f32.gmra.mxu0 %v217
    %v256 = vpop.f32.mrf.mxu0
    %v257 = vadd.f32 %v237, %v256
    %258 = vmatmul.f32.gmra.mxu0 %v218
    %v259 = vpop.f32.mrf.mxu0
    %v260 = vadd.f32 %v237, %v259
    %261 = vdwg.mxu0
    %v262 = vld [vmem:[#allocation10] sm:$0xff]
    %v263 = vld [vmem:[#allocation10 + $0x8] sm:$0xff]
    %v264 = vld [vmem:[#allocation10 + $0x10] sm:$0xff]
    %v265 = vld [vmem:[#allocation10 + $0x18] sm:$0xff]
    %v266 = vld [vmem:[#allocation10 + $0x20] sm:$0xff]
    %v267 = vld [vmem:[#allocation10 + $0x28] sm:$0xff]
    %v268 = vld [vmem:[#allocation10 + $0x30] sm:$0xff]
    %v269 = vld [vmem:[#allocation10 + $0x38] sm:$0xff]
    %v270 = vld [vmem:[#allocation10 + $0x40] sm:$0xff]
    %v271 = vld [vmem:[#allocation10 + $0x48] sm:$0xff]
    %v272 = vld [vmem:[#allocation10 + $0x50] sm:$0xff]
    %v273 = vld [vmem:[#allocation10 + $0x58] sm:$0xff]
    %v274 = vld [vmem:[#allocation10 + $0x60] sm:$0xff]
    %v275 = vld [vmem:[#allocation10 + $0x68] sm:$0xff]
    %v276 = vld [vmem:[#allocation10 + $0x70] sm:$0xff]
    %v277 = vld [vmem:[#allocation10 + $0x78] sm:$0xff]
    %v278 = vld [vmem:[#allocation11] sm:$0xff]
    %v279 = vld [vmem:[#allocation11 + $0x8] sm:$0xff]
    %v280 = vld [vmem:[#allocation11 + $0x10] sm:$0xff]
    %v281 = vld [vmem:[#allocation11 + $0x18] sm:$0xff]
    %v282 = vld [vmem:[#allocation11 + $0x20] sm:$0xff]
    %v283 = vld [vmem:[#allocation11 + $0x28] sm:$0xff]
    %v284 = vld [vmem:[#allocation11 + $0x30] sm:$0xff]
    %v285 = vld [vmem:[#allocation11 + $0x38] sm:$0xff]
    %v286 = vld [vmem:[#allocation11 + $0x40] sm:$0xff]
    %v287 = vld [vmem:[#allocation11 + $0x48] sm:$0xff]
    %v288 = vld [vmem:[#allocation11 + $0x50] sm:$0xff]
    %v289 = vld [vmem:[#allocation11 + $0x58] sm:$0xff]
    %v290 = vld [vmem:[#allocation11 + $0x60] sm:$0xff]
    %v291 = vld [vmem:[#allocation11 + $0x68] sm:$0xff]
    %v292 = vld [vmem:[#allocation11 + $0x70] sm:$0xff]
    %v293 = vld [vmem:[#allocation11 + $0x78] sm:$0xff]
    %294 = vmatpush.msra.mxu0 %v277
    %295 = vmatpush.msra.mxu0 %v276
    %296 = vmatpush.msra.mxu0 %v275
    %297 = vmatpush.msra.mxu0 %v274
    %298 = vmatpush.msra.mxu0 %v273
    %299 = vmatpush.msra.mxu0 %v272
    %300 = vmatpush.msra.mxu0 %v271
    %301 = vmatpush.msra.mxu0 %v270
    %302 = vmatpush.msra.mxu0 %v269
    %303 = vmatpush.msra.mxu0 %v268
    %304 = vmatpush.msra.mxu0 %v267
    %305 = vmatpush.msra.mxu0 %v266
    %306 = vmatpush.msra.mxu0 %v265
    %307 = vmatpush.msra.mxu0 %v264
    %308 = vmatpush.msra.mxu0 %v263
    %309 = vmatpush.msra.mxu0 %v262
    %310 = vmatmul.f32.gmra.mxu0 %v257
    %v311 = vpop.f32.mrf.mxu0
    %v312 = vadd.f32 0.0, %v311
    %313 = vmatmul.f32.gmra.mxu0 %v260
    %v314 = vpop.f32.mrf.mxu0
    %v315 = vadd.f32 0.0, %v314
    %316 = vdwg.mxu0
    %v317 = vlaneseq
    %v318 = vand.u32 %v317, 127
    %vm319 = vcmp.lt.s32.totalorder %v318, 8
    %v320 = vsel %vm319, %v312, -inf
    %v321 = vsel %vm319, %v315, -inf
    %322 = vmax.xlane.f32.xlu0 %v320
    %v323 = vpop.xlane.xlu0 %322
    %324 = vmax.xlane.f32.xlu0 %v321
    %v325 = vpop.xlane.xlu0 %324
    %vm326 = vcmp.eq.f32.partialorder %v320, %v323
    %vm327 = vcmp.eq.f32.partialorder %v321, %v325
    %vm328 = vmand %vm326, %vm319
    %vm329 = vmand %vm327, %vm319
    %v330 = vsel %vm328, %v318, 128
    %v331 = vsel %vm329, %v318, 128
    %v332 = vand.u32 %v330, 65535
    %v333 = vshra.s32 %v330, 16
    %v334 = vcvt.s32.f32 %v332
    %v335 = vcvt.s32.f32 %v333
    %336 = vmin.xlane.f32.xlu0 %v335
    %v337 = vpop.xlane.xlu0 %336
    %vm338 = vcmp.eq.f32.partialorder %v335, %v337
    %v339 = vsel %vm338, %v334, inf
    %340 = vmin.xlane.f32.xlu0 %v339
    %v341 = vpop.xlane.xlu0 %340
    %v342 = vcvt.f32.s32 %v341
    %v343 = vcvt.f32.s32 %v337
    %v344 = vshll.u32 %v343, 16
    %v345 = vadd.s32 %v344, %v342
    %v346 = vand.u32 %v331, 65535
    %v347 = vshra.s32 %v331, 16
    %v348 = vcvt.s32.f32 %v346
    %v349 = vcvt.s32.f32 %v347
    %350 = vmin.xlane.f32.xlu0 %v349
    %v351 = vpop.xlane.xlu0 %350
    %vm352 = vcmp.eq.f32.partialorder %v349, %v351
    %v353 = vsel %vm352, %v348, inf
    %354 = vmin.xlane.f32.xlu0 %v353
    %v355 = vpop.xlane.xlu0 %354
    %v356 = vcvt.f32.s32 %v355
    %v357 = vcvt.f32.s32 %v351
    %v358 = vshll.u32 %v357, 16
    %v359 = vadd.s32 %v358, %v356
    %vm360 = vcmp.eq.s32.totalorder %v318, %v345
    %vm361 = vcmp.eq.s32.totalorder %v318, %v359
    %v362 = vsel %vm360, 1, 0
    %v363 = vsel %vm361, 1, 0
    %v364 = vcvt.s32.f32 %v362
    %v365 = vcvt.s32.f32 %v363
    %366 = vmatpush.msra.mxu0 %v293
    %367 = vmatpush.msra.mxu0 %v292
    %368 = vmatpush.msra.mxu0 %v291
    %369 = vmatpush.msra.mxu0 %v290
    %370 = vmatpush.msra.mxu0 %v289
    %371 = vmatpush.msra.mxu0 %v288
    %372 = vmatpush.msra.mxu0 %v287
    %373 = vmatpush.msra.mxu0 %v286
    %374 = vmatpush.msra.mxu0 %v285
    %375 = vmatpush.msra.mxu0 %v284
    %376 = vmatpush.msra.mxu0 %v283
    %377 = vmatpush.msra.mxu0 %v282
    %378 = vmatpush.msra.mxu0 %v281
    %379 = vmatpush.msra.mxu0 %v280
    %380 = vmatpush.msra.mxu0 %v279
    %381 = vmatpush.msra.mxu0 %v278
    %382 = vmatmul.f32.gmra.mxu0 %v364
    %v383 = vpop.f32.mrf.mxu0
    %v384 = vadd.f32 0.0, %v383
    %385 = vmatmul.f32.gmra.mxu0 %v365
    %v386 = vpop.f32.mrf.mxu0
    %v387 = vadd.f32 0.0, %v386
    %388 = vdwg.mxu0
    %v389 = vadd.f32 %v312, %v384
    %v390 = vadd.f32 %v315, %v387
    %391 = vst [vmem:[#allocation13] sm:$0xff] %v389
    %392 = vst [vmem:[#allocation13 + $0x8] sm:$0xff] %v390
    // Predicated region
    $region62: #{tpu_custom_call.1} parent=1 // pred_check
      _
    $region63: #{tpu_custom_call.1} parent=1 // pred_check_branch
      %394 = sbr.rel (0) target = $region65
    $region64: #{tpu_custom_call.1} parent=1 // pred_region
      %396 = vsyncadd [#allocation4], 0
      %s397 = sshll.u32 [#allocation13], 4
      %s398 = int_to_ptr.vmem [resolvable:$true] %s397
      %s399 = sshll.u32 %s9, 4
      %s400 = int_to_ptr.hbm [resolvable:$true] %s399
      %405 = dma.vmem_to_hbm [thread:$0]  %s398, 256, %s400, [#allocation4], 128, 128, 8
    $region65: #{tpu_custom_call.1} parent=1 // pred_fallthru
      _
    // Predicated region
    $region66: #{tpu_custom_call.1} parent=1 // pred_check
      _
    $region67: #{tpu_custom_call.1} parent=1 // pred_check_branch
      %407 = sbr.rel (0) target = $region69
    $region68: #{tpu_custom_call.1} parent=1 // pred_region
      %409 = dma.done [#allocation4], 256
    $region69: #{tpu_custom_call.1} parent=1 // pred_fallthru
      _
    %410 = vsyncpa [#allocation3], 1
    %411 = vsyncpa [#allocation6], 1
    %412 = vsyncpa [#allocation9], 1
    %413 = vsyncpa [#allocation12], 1
    %414 = vsyncpa [#allocation4], 1

</llo_original>
